<compile_context>
chip_gen: v7x
topology: tpu7x:2x2x1
jax: 0.10.0
libtpu: 0.0.40
codegen_flags: <defaults>
</compile_context>

<pallas_src>
import math
import functools

import jax
import jax.numpy as jnp
from jax.experimental import pallas as pl
from jax.experimental.pallas import tpu as pltpu


def _tokenizer_kernel(patch_ref, w_ref, pe_ref, o_ref):
    # patch_ref: (1, tp, C*K) bf16 | w_ref: (C*K, width) bf16 (VMEM-resident)
    # pe_ref:    (tp, width) f32 (sinusoidal PE + conv bias, pre-folded)
    # o_ref:     (1, tp, width) f32
    acc = jnp.dot(patch_ref[0], w_ref[...], preferred_element_type=jnp.float32)
    o_ref[0] = (acc + pe_ref[...]).astype(o_ref.dtype)


def sinusoidal_pe(n_pos, d_model, dtype=jnp.float32):
    """Matches SinusoidalPositionalEncoding1D: pe[:, 0::2]=sin, pe[:, 1::2]=cos."""
    position = jnp.arange(n_pos, dtype=jnp.float32)[:, None]                       # [N, 1]
    div_term = jnp.exp(
        jnp.arange(0, d_model, 2, dtype=jnp.float32) * (-math.log(10000.0) / d_model)
    )                                                                              # [d/2]
    angles = position * div_term                                                   # [N, d/2]
    pe = jnp.zeros((n_pos, d_model), dtype=jnp.float32)
    pe = pe.at[:, 0::2].set(jnp.sin(angles))
    pe = pe.at[:, 1::2].set(jnp.cos(angles))
    return pe.astype(dtype)


def _pick_patch_tile(n_patches, cap=1024):
    """Largest patch-axis tile: full Np when small, else the biggest divisor of Np
    <= cap that keeps the sublane dim a multiple of 8."""
    if n_patches <= cap:
        return n_patches
    for d in range(cap, 7, -1):
        if n_patches % d == 0 and d % 8 == 0:
            return d
    # No clean divisor: fall back to untiled patch axis (legal, just larger VMEM).
    return n_patches


@functools.partial(jax.jit, static_argnames=("patch_size",))
def csi_tokenizer_forward(x, conv_w, conv_b, patch_size=8):
    """
    x:      [B, C, L]            (Conv1d NCL input, like PyTorch)
    conv_w: [width, C, patch_size]
    conv_b: [width]
    returns [B, L // patch_size, width]  (f32, matching the module output)
    """
    B, C, L = x.shape
    width = conv_w.shape[0]
    K = patch_size
    Np = L // K
    CK = C * K

    # --- glue: patchify (Conv1d with stride == kernel) -> [B, Np, C*K] in bf16 ---
    # bf16 cast first so the transpose pass and the kernel's dominant read are
    # half-width; the matmul still accumulates in f32 on the MXU.
    # TODO(synk): fuse this transpose into the kernel (blocked x load + in-tile
    # relayout) to drop the extra HBM pass; the (C, tp, K) -> (tp, C*K) relayout
    # crosses (8,128) tiles, so it is kept as XLA glue for now.
    patches = (
        x.astype(jnp.bfloat16)
        .reshape(B, C, Np, K)
        .transpose(0, 2, 1, 3)
        .reshape(B, Np, CK)
    )
    w_flat = conv_w.transpose(1, 2, 0).reshape(CK, width).astype(jnp.bfloat16)

    # PE table with the conv bias folded in: one fewer input stream, and no
    # B-times-redundant jnp.tile materialization in HBM.
    pe_bias = sinusoidal_pe(Np, width) + conv_b.astype(jnp.float32)[None, :]   # [Np, width]

    tp = _pick_patch_tile(Np)
    grid = (B, Np // tp)

    # Explicit VMEM budget for the enlarged tile (double-buffered in/PE/out + weight),
    # clamped well under v7x's 64 MiB physical VMEM.
    per_step_bytes = tp * CK * 2 + 2 * (tp * width * 4) + CK * width * 2
    vmem_limit = int(min(max(3 * per_step_bytes, 16 * 1024 * 1024), 48 * 1024 * 1024))

    cost = pl.CostEstimate(
        flops=2 * B * Np * CK * width,
        transcendentals=0,
        bytes_accessed=(B * Np * CK * 2)       # patches read (bf16)
        + (CK * width * 2)                     # weight read (bf16)
        + (Np * width * 4)                     # PE+bias read (f32, once)
        + (B * Np * width * 4),                # output write (f32)
    )

    out = pl.pallas_call(
        _tokenizer_kernel,
        out_shape=jax.ShapeDtypeStruct((B, Np, width), jnp.float32),
        grid_spec=pltpu.PrefetchScalarGridSpec(
            num_scalar_prefetch=0,
            grid=grid,
            in_specs=[
                pl.BlockSpec((1, tp, CK), lambda b, j: (b, j, 0)),     # patches tile
                pl.BlockSpec((CK, width), lambda b, j: (0, 0)),        # weight (resident)
                pl.BlockSpec((tp, width), lambda b, j: (j, 0)),        # PE+bias tile
            ],
            out_specs=pl.BlockSpec((1, tp, width), lambda b, j: (b, j, 0)),
        ),
        compiler_params=pltpu.CompilerParams(
            dimension_semantics=("parallel", "parallel"),
            vmem_limit_bytes=vmem_limit,
        ),
        cost_estimate=cost,
    )(patches, w_flat, pe_bias)

    return out


if __name__ == "__main__":
    # Module-consistent small shapes: subcarriers C=32 (fixed by the Conv1d),
    # patch_size=8, width=512 (module default), L=128 -> 16 patches, batch=2.
    B, C, L = 2, 32, 128
    width, patch_size = 512, 8

    key = jax.random.PRNGKey(0)
    kx, kw, kb = jax.random.split(key, 3)

    x = jax.random.normal(kx, (B, C, L), dtype=jnp.float32)

    # Deterministic Conv1d-style uniform init.
    fan_in = C * patch_size
    bound = 1.0 / math.sqrt(fan_in)
    conv_w = jax.random.uniform(kw, (width, C, patch_size), jnp.float32, -bound, bound)
    conv_b = jax.random.uniform(kb, (width,), jnp.float32, -bound, bound)

    out = csi_tokenizer_forward(x, conv_w, conv_b, patch_size=patch_size)
    out = jax.block_until_ready(out)

    # Sanity: pure-f32 JAX reference of the module math (bf16 matmul inputs in the
    # kernel -> loosened tolerance).
    Np = L // patch_size
    patches_ref = x.reshape(B, C, Np, patch_size).transpose(0, 2, 1, 3).reshape(B, Np, -1)
    ref = jnp.einsum(
        "bnk,ko->bno",
        patches_ref,
        conv_w.transpose(1, 2, 0).reshape(C * patch_size, width),
    ) + conv_b
    ref = ref + sinusoidal_pe(Np, width)[None]

    assert out.shape == (B, Np, width)
    assert jnp.allclose(out, ref, atol=3e-2, rtol=3e-2), float(jnp.max(jnp.abs(out - ref)))

    print("KERNEL_OK")
</pallas_src>

<mosaic_0001>
module attributes {stable_mosaic.version = 11 : i64} {
  func.func @_tokenizer_kernel(%arg0: i32, %arg1: i32, %arg2: memref<1x16x256xbf16, #tpu.memory_space<vmem>>, %arg3: memref<256x512xbf16, #tpu.memory_space<vmem>>, %arg4: memref<16x512xf32, #tpu.memory_space<vmem>>, %arg5: memref<1x16x512xf32, #tpu.memory_space<vmem>>) attributes {dimension_semantics = [#tpu.dimension_semantics<parallel>, #tpu.dimension_semantics<parallel>], iteration_bounds = array<i64: 2, 1>, scalar_prefetch = 0 : i64, scratch_operands = 0 : i64, tpu.core_type = #tpu.core_type<tc>, window_params = [{transform_indices = @transform_0, window_bounds = array<i64: 1, 16, 256>}, {pipeline_mode = #tpu.pipeline_mode<synchronous>, transform_indices = @transform_1, window_bounds = array<i64: 256, 512>}, {transform_indices = @transform_2, window_bounds = array<i64: 16, 512>}, {transform_indices = @transform_3, window_bounds = array<i64: 1, 16, 512>}]} {
    %c0 = arith.constant 0 : index
    %c0_0 = arith.constant 0 : index
    %c0_1 = arith.constant 0 : index
    %0 = vector.load %arg2[%c0, %c0_0, %c0_1] : memref<1x16x256xbf16, #tpu.memory_space<vmem>>, vector<1x16x256xbf16>
    %1 = vector.shape_cast %0 : vector<1x16x256xbf16> to vector<16x256xbf16>
    %c0_2 = arith.constant 0 : index
    %c0_3 = arith.constant 0 : index
    %2 = vector.load %arg3[%c0_2, %c0_3] : memref<256x512xbf16, #tpu.memory_space<vmem>>, vector<256x512xbf16>
    %cst = arith.constant dense<0.000000e+00> : vector<16x512xf32>
    %3 = tpu.matmul %1, %2, %cst {dimension_numbers = #tpu.dot_dimension_numbers<[1], [0], [0], [1], [0, 0, 1, 1], [], []>} : vector<16x256xbf16>, vector<256x512xbf16>, vector<16x512xf32> -> vector<16x512xf32>
    %c0_4 = arith.constant 0 : index
    %c0_5 = arith.constant 0 : index
    %4 = vector.load %arg4[%c0_4, %c0_5] : memref<16x512xf32, #tpu.memory_space<vmem>>, vector<16x512xf32>
    %5 = arith.addf %3, %4 : vector<16x512xf32>
    %c0_6 = arith.constant 0 : index
    %c0_7 = arith.constant 0 : index
    %c0_8 = arith.constant 0 : index
    %6 = vector.load %arg5[%c0_6, %c0_7, %c0_8] : memref<1x16x512xf32, #tpu.memory_space<vmem>>, vector<1x16x512xf32>
    %7 = vector.shape_cast %6 : vector<1x16x512xf32> to vector<16x512xf32>
    %8 = vector.shape_cast %5 : vector<16x512xf32> to vector<1x16x512xf32>
    tpu.vector_store %arg5[%c0_6, %c0_7, %c0_8], %8 {strides = array<i32>} : memref<1x16x512xf32, #tpu.memory_space<vmem>>, vector<1x16x512xf32>,
    return
  }
  func.func @transform_0(%arg0: i32, %arg1: i32) -> (i32, i32, i32) {
    %c0_i32 = arith.constant 0 : i32
    %c0_i32_0 = arith.constant 0 : i32
    return %arg0, %arg1, %c0_i32 : i32, i32, i32
  }
  func.func @transform_1(%arg0: i32, %arg1: i32) -> (i32, i32) {
    %c0_i32 = arith.constant 0 : i32
    %c0_i32_0 = arith.constant 0 : i32
    %c0_i32_1 = arith.constant 0 : i32
    return %c0_i32, %c0_i32_0 : i32, i32
  }
  func.func @transform_2(%arg0: i32, %arg1: i32) -> (i32, i32) {
    %c0_i32 = arith.constant 0 : i32
    %c0_i32_0 = arith.constant 0 : i32
    return %arg1, %c0_i32 : i32, i32
  }
  func.func @transform_3(%arg0: i32, %arg1: i32) -> (i32, i32, i32) {
    %c0_i32 = arith.constant 0 : i32
    %c0_i32_0 = arith.constant 0 : i32
    return %arg0, %arg1, %c0_i32 : i32, i32, i32
  }
}

</mosaic_0001>

<llo_original>
// kernel: csi_tokenizer_forward.1
$region0: #{csi_tokenizer_forward.1}
  #allocation0 [shape = 'u32[]', space=smem, size = 0x4, offset = 0x4, fixed_abs, tag = 'smem constant byte address 0x4 - core index']
  #allocation1 [shape = 'u32[144,128]{1,0:T(1,128)}', space=vmem, size = 0x12000, scoped, tag = 'internal scratch']
  %s0 = inlined_call_operand.vmem [shape: bf16[2,16,256], index: 0, kind: input, shape index: {}]
  %s1 = inlined_call_operand.vmem [shape: bf16[256,512], index: 1, kind: input, shape index: {}]
  %s2 = inlined_call_operand.vmem [shape: f32[16,512], index: 2, kind: input, shape index: {}]
  %s3 = inlined_call_operand.hbm [shape: f32[2,16,512], index: 3, kind: output, shape index: {}]
  %s4 = sld [smem:[#allocation0]]
  $region45: #{csi_tokenizer_forward.1} parent=0
    _
  %s6 = ssub.s32 1, %s4
  %s7 = scalar_select 0, %s6, %s4
  $region1: #{csi_tokenizer_forward.1} parent=0
    #allocation2 [shape = 'u8[65536]{0}', space=vmem, size = 0x10000, scoped, tag = 'output window, operand 0']
    #allocation3 [shape = 's32[2]{0}', space=sflag, size = 0x8, scoped, tag = 'scoped memory for csi_tokenizer_forward.1']
    %8 = vsyncpa [#allocation3], 0
    %s9 = scalar_lea.sflag [#allocation3], 1
    %10 = vsyncpa %s9, 0
    loop: start=0, step=1, limit=4
    $region2: #{csi_tokenizer_forward.1} parent=1 // loop_pre_header
      _
    $region3: #{csi_tokenizer_forward.1} parent=1 // loop_header
      %s12 = sphi 0, %s16
      %p13 = scmp.ge.s32.totalorder %s12, 4
      %s19 = sphi 0, %s31
      %s20 = sphi 0, %s27
      %s21 = sphi 0, %s19
      %s22 = sphi 0, %s20
      %s23 = sphi 0, %s21
      %s24 = sphi 0, %s22
      %s36 = sphi 0, %s38
      %s39 = sphi 0, %s36
      %s40 = sphi 0, %s39
      %s56 = sphi 0, %s40
      %s60 = sphi 0, %s60
      %s62 = sphi 0, %s60
      %s63 = sphi 0, %s62
      %s77 = sphi 0, %s63
      %s83 = sphi 0, %s85
      %s86 = sphi 0, %s83
      %s87 = sphi 0, %s86
      %s103 = sphi 0, %s87
      %s111 = sphi 0, %s113
      %s114 = sphi 0, %s111
      %s115 = sphi 0, %s114
      %s131 = sphi 0, %s115
    $region4: #{csi_tokenizer_forward.1} parent=1 // loop_header_branch
      %15 = sbr.rel (%p13) target = $region8
    $region5: #{csi_tokenizer_forward.1} parent=1 // loop_body
      %s17 = ssub.s32 %s12, 1
      %s18 = ssub.s32 %s12, 2
      %s25 = sadd.s32 1, %s20
      %p26 = scmp.ge.s32.totalorder %s25, 1
      %s27 = scalar_select %p26, 0, %s25
      %s28 = sadd.s32 1, %s19
      %s29 = scalar_select %p26, %s28, %s19
      %p30 = scmp.ge.s32.totalorder %s29, 2
      %s31 = scalar_select %p30, 0, %s29
      %s32 = ssub.s32 %s19, %s31
      %s33 = ssub.s32 %s20, %s27
      %s34 = sor.u32 %s32, %s33
      %p35 = scmp.eq.s32.totalorder %s34, 0
      %s37 = sadd.s32 %s36, 1
      %s38 = scalar_select %p35, %s36, %s37
      %p41 = pneg %p35
      %p42 = scmp.eq.s32.totalorder %s12, 1
      %p43 = por %p41, %p42
      %p44 = scmp.ne.s32.totalorder %s36, %s39
      %p45 = scmp.eq.s32.totalorder %s12, 0
      %p46 = por %p44, %p45
      %p47 = scmp.ne.s32.totalorder %s36, %s39
      %p48 = scmp.eq.s32.totalorder %s17, 1
      %p49 = por %p47, %p48
      %p50 = scmp.ne.s32.totalorder %s39, %s40
      %p51 = scmp.eq.s32.totalorder %s17, 0
      %p52 = por %p50, %p51
      %p53 = scmp.ne.s32.totalorder %s39, %s40
      %p54 = scmp.eq.s32.totalorder %s18, 1
      %p55 = por %p53, %p54
      %p57 = scmp.ne.s32.totalorder %s40, %s56
      %p58 = scmp.eq.s32.totalorder %s18, 0
      %p59 = por %p57, %p58
      %s61 = sadd.s32 %s60, 1
      %p64 = scmp.eq.s32.totalorder %s12, 1
      %p65 = scmp.ne.s32.totalorder %s60, %s62
      %p66 = scmp.eq.s32.totalorder %s12, 0
      %p67 = por %p65, %p66
      %p68 = scmp.ne.s32.totalorder %s60, %s62
      %p69 = scmp.eq.s32.totalorder %s17, 1
      %p70 = por %p68, %p69
      %p71 = scmp.ne.s32.totalorder %s62, %s63
      %p72 = scmp.eq.s32.totalorder %s17, 0
      %p73 = por %p71, %p72
      %p74 = scmp.ne.s32.totalorder %s62, %s63
      %p75 = scmp.eq.s32.totalorder %s18, 1
      %p76 = por %p74, %p75
      %p78 = scmp.ne.s32.totalorder %s63, %s77
      %p79 = scmp.eq.s32.totalorder %s18, 0
      %p80 = por %p78, %p79
      %s81 = ssub.s32 %s20, %s27
      %p82 = scmp.eq.s32.totalorder %s81, 0
      %s84 = sadd.s32 %s83, 1
      %s85 = scalar_select %p82, %s83, %s84
      %p88 = pneg %p82
      %p89 = scmp.eq.s32.totalorder %s12, 1
      %p90 = por %p88, %p89
      %p91 = scmp.ne.s32.totalorder %s83, %s86
      %p92 = scmp.eq.s32.totalorder %s12, 0
      %p93 = por %p91, %p92
      %p94 = scmp.ne.s32.totalorder %s83, %s86
      %p95 = scmp.eq.s32.totalorder %s17, 1
      %p96 = por %p94, %p95
      %p97 = scmp.ne.s32.totalorder %s86, %s87
      %p98 = scmp.eq.s32.totalorder %s17, 0
      %p99 = por %p97, %p98
      %p100 = scmp.ne.s32.totalorder %s86, %s87
      %p101 = scmp.eq.s32.totalorder %s18, 1
      %p102 = por %p100, %p101
      %p104 = scmp.ne.s32.totalorder %s87, %s103
      %p105 = scmp.eq.s32.totalorder %s18, 0
      %p106 = por %p104, %p105
      %s107 = ssub.s32 %s19, %s31
      %s108 = ssub.s32 %s20, %s27
      %s109 = sor.u32 %s107, %s108
      %p110 = scmp.eq.s32.totalorder %s109, 0
      %s112 = sadd.s32 %s111, 1
      %s113 = scalar_select %p110, %s111, %s112
      %p116 = pneg %p110
      %p117 = scmp.eq.s32.totalorder %s12, 1
      %p118 = por %p116, %p117
      %p119 = scmp.ne.s32.totalorder %s111, %s114
      %p120 = scmp.eq.s32.totalorder %s12, 0
      %p121 = por %p119, %p120
      %p122 = scmp.ne.s32.totalorder %s111, %s114
      %p123 = scmp.eq.s32.totalorder %s17, 1
      %p124 = por %p122, %p123
      %p125 = scmp.ne.s32.totalorder %s114, %s115
      %p126 = scmp.eq.s32.totalorder %s17, 0
      %p127 = por %p125, %p126
      %p128 = scmp.ne.s32.totalorder %s114, %s115
      %p129 = scmp.eq.s32.totalorder %s18, 1
      %p130 = por %p128, %p129
      %p132 = scmp.ne.s32.totalorder %s115, %s131
      %p133 = scmp.eq.s32.totalorder %s18, 0
      %p134 = por %p132, %p133
      %p135 = scmp.le.s32.totalorder 1, %s12
      %p136 = scmp.lt.s32.totalorder %s12, 3
      %p137 = pnand %p135, %p136
      %p138 = pneg %p137
      // Predicated region
      $region9: #{csi_tokenizer_forward.1} parent=5 // pred_check
        _
      $region10: #{csi_tokenizer_forward.1} parent=5 // pred_check_branch
        %140 = sbr.rel (%p137) target = $region12
      $region11: #{csi_tokenizer_forward.1} parent=5 // pred_region
        %s141 = ssub.s32 %s12, 1
        // Predicated region
        $region13: #{csi_tokenizer_forward.1} parent=11 // pred_check
          %p142 = pneg %p73
        $region14: #{csi_tokenizer_forward.1} parent=11 // pred_check_branch
          %144 = sbr.rel (%p142) target = $region16
        $region15: #{csi_tokenizer_forward.1} parent=11 // pred_region
          _
        $region16: #{csi_tokenizer_forward.1} parent=11 // pred_fallthru
          _
        // Predicated region
        $region17: #{csi_tokenizer_forward.1} parent=11 // pred_check
          %p145 = pneg %p99
        $region18: #{csi_tokenizer_forward.1} parent=11 // pred_check_branch
          %147 = sbr.rel (%p145) target = $region20
        $region19: #{csi_tokenizer_forward.1} parent=11 // pred_region
          %s148 = smul.u32 2, %s22
          %p149 = scmp.lt.s32.totalorder %s148, 1
          %s150 = scalar_select %p149, %s148, 1
          %s151 = smul.addr %s150, 4
          %s152 = smul.addr %s151, 8
          %s153 = scalar_lea.vmem %s2, %s152
          %s154 = smul.u32 2, %s22
        $region20: #{csi_tokenizer_forward.1} parent=11 // pred_fallthru
          _
      $region12: #{csi_tokenizer_forward.1} parent=5 // pred_fallthru
        _
      %p155 = scmp.lt.s32.totalorder %s12, 2
      // Predicated region
      $region21: #{csi_tokenizer_forward.1} parent=5 // pred_check
        %p156 = pneg %p155
      $region22: #{csi_tokenizer_forward.1} parent=5 // pred_check_branch
        %158 = sbr.rel (%p156) target = $region24
      $region23: #{csi_tokenizer_forward.1} parent=5 // pred_region
        // Predicated region
        $region25: #{csi_tokenizer_forward.1} parent=23 // pred_check
          %p159 = pneg %p46
        $region26: #{csi_tokenizer_forward.1} parent=23 // pred_check_branch
          %161 = sbr.rel (%p159) target = $region28
        $region27: #{csi_tokenizer_forward.1} parent=23 // pred_region
          %s162 = smul.u32 2, %s20
          %p163 = scmp.lt.s32.totalorder %s19, 1
          %s164 = scalar_select %p163, %s19, 1
          %p165 = scmp.lt.s32.totalorder %s162, 1
          %s166 = scalar_select %p165, %s162, 1
          %s167 = smul.addr %s166, 2
          %s168 = smul.addr %s164, 4
          %s169 = sadd.s32 %s167, %s168
          %s170 = smul.addr %s169, 4
          %s171 = scalar_lea.vmem %s0, %s170
          %s172 = smul.u32 2, %s20
        $region28: #{csi_tokenizer_forward.1} parent=23 // pred_fallthru
          _
      $region24: #{csi_tokenizer_forward.1} parent=5 // pred_fallthru
        _
      %p173 = scmp.le.s32.totalorder 1, %s12
      %p174 = scmp.lt.s32.totalorder %s12, 3
      %p175 = pnand %p173, %p174
      %p176 = pneg %p175
      // Predicated region
      $region29: #{csi_tokenizer_forward.1} parent=5 // pred_check
        _
      $region30: #{csi_tokenizer_forward.1} parent=5 // pred_check_branch
        %178 = sbr.rel (%p175) target = $region32
      $region31: #{csi_tokenizer_forward.1} parent=5 // pred_region
        %s179 = ssub.s32 %s12, 1
        %s180 = smul.u32 2, %s22
        %p181 = scmp.lt.s32.totalorder %s21, 1
        %s182 = scalar_select %p181, %s21, 1
        %p183 = scmp.lt.s32.totalorder %s180, 1
        %s184 = scalar_select %p183, %s180, 1
        %s185 = smul.addr %s184, 2
        %s186 = smul.addr %s182, 4
        %s187 = sadd.s32 %s185, %s186
        %s188 = smul.addr %s187, 4
        %s189 = scalar_lea.vmem %s0, %s188
        %p190 = pneg %p52
        %p191 = pneg %p49
        %p192 = pneg %p73
        %p193 = pneg %p70
        %s194 = smul.u32 2, %s22
        %p195 = scmp.lt.s32.totalorder %s194, 1
        %s196 = scalar_select %p195, %s194, 1
        %s197 = smul.addr %s196, 4
        %s198 = smul.addr %s197, 8
        %s199 = scalar_lea.vmem %s2, %s198
        %p200 = pneg %p99
        %p201 = pneg %p96
        %p202 = pneg %p127
        %p203 = pneg %p124
        %s204 = sand.u32 %s114, 1
        %s205 = scalar_lea.sflag [#allocation3], %s204
        %s206 = sand.u32 %s114, 1
        %s207 = smul.addr %s206, 64
        %s208 = scalar_lea.vmem [#allocation2], %s207
        %s209 = smul.u32 2, %s22
        %p210 = scmp.lt.s32.totalorder %s21, 1
        %s211 = scalar_select %p210, %s21, 1
        %p212 = scmp.lt.s32.totalorder %s209, 1
        %s213 = scalar_select %p212, %s209, 1
        %s214 = smul.addr %s213, 2
        %s215 = smul.addr %s211, 4
        %s216 = sadd.s32 %s214, %s215
        %s217 = smul.addr %s216, 4
        %s218 = scalar_lea.vmem %s0, %s217
        %s219 = smul.u32 2, %s22
        %s220 = smul.u32 2, %s22
        %p221 = scmp.lt.s32.totalorder %s220, 1
        %s222 = scalar_select %p221, %s220, 1
        %s223 = smul.addr %s222, 4
        %s224 = smul.addr %s223, 8
        %s225 = scalar_lea.vmem %s2, %s224
        %s226 = smul.u32 2, %s22
        %s227 = smul.u32 2, %s22
        %v228 = vld [vmem:[%s218] sm:$0xff]
        %v229 = vld [vmem:[%s218 + $0x8] sm:$0xff]
        %v230 = vld [vmem:[%s1] sm:$0xff]
        %v231 = vld [vmem:[%s1 + $0x8] sm:$0xff]
        %v232 = vld [vmem:[%s1 + $0x10] sm:$0xff]
        %v233 = vld [vmem:[%s1 + $0x18] sm:$0xff]
        %v234 = vld [vmem:[%s1 + $0x20] sm:$0xff]
        %v235 = vld [vmem:[%s1 + $0x28] sm:$0xff]
        %v236 = vld [vmem:[%s1 + $0x30] sm:$0xff]
        %v237 = vld [vmem:[%s1 + $0x38] sm:$0xff]
        %v238 = vld [vmem:[%s1 + $0x40] sm:$0xff]
        %v239 = vld [vmem:[%s1 + $0x48] sm:$0xff]
        %v240 = vld [vmem:[%s1 + $0x50] sm:$0xff]
        %v241 = vld [vmem:[%s1 + $0x58] sm:$0xff]
        %v242 = vld [vmem:[%s1 + $0x60] sm:$0xff]
        %v243 = vld [vmem:[%s1 + $0x68] sm:$0xff]
        %v244 = vld [vmem:[%s1 + $0x70] sm:$0xff]
        %v245 = vld [vmem:[%s1 + $0x78] sm:$0xff]
        %v246 = vld [vmem:[%s1 + $0x80] sm:$0xff]
        %v247 = vld [vmem:[%s1 + $0x88] sm:$0xff]
        %v248 = vld [vmem:[%s1 + $0x90] sm:$0xff]
        %v249 = vld [vmem:[%s1 + $0x98] sm:$0xff]
        %v250 = vld [vmem:[%s1 + $0xa0] sm:$0xff]
        %v251 = vld [vmem:[%s1 + $0xa8] sm:$0xff]
        %v252 = vld [vmem:[%s1 + $0xb0] sm:$0xff]
        %v253 = vld [vmem:[%s1 + $0xb8] sm:$0xff]
        %v254 = vld [vmem:[%s1 + $0xc0] sm:$0xff]
        %v255 = vld [vmem:[%s1 + $0xc8] sm:$0xff]
        %v256 = vld [vmem:[%s1 + $0xd0] sm:$0xff]
        %v257 = vld [vmem:[%s1 + $0xd8] sm:$0xff]
        %v258 = vld [vmem:[%s1 + $0xe0] sm:$0xff]
        %v259 = vld [vmem:[%s1 + $0xe8] sm:$0xff]
        %v260 = vld [vmem:[%s1 + $0xf0] sm:$0xff]
        %v261 = vld [vmem:[%s1 + $0xf8] sm:$0xff]
        %v262 = vld [vmem:[%s1 + $0x100] sm:$0xff]
        %v263 = vld [vmem:[%s1 + $0x108] sm:$0xff]
        %v264 = vld [vmem:[%s1 + $0x110] sm:$0xff]
        %v265 = vld [vmem:[%s1 + $0x118] sm:$0xff]
        %v266 = vld [vmem:[%s1 + $0x120] sm:$0xff]
        %v267 = vld [vmem:[%s1 + $0x128] sm:$0xff]
        %v268 = vld [vmem:[%s1 + $0x130] sm:$0xff]
        %v269 = vld [vmem:[%s1 + $0x138] sm:$0xff]
        %v270 = vld [vmem:[%s1 + $0x140] sm:$0xff]
        %v271 = vld [vmem:[%s1 + $0x148] sm:$0xff]
        %v272 = vld [vmem:[%s1 + $0x150] sm:$0xff]
        %v273 = vld [vmem:[%s1 + $0x158] sm:$0xff]
        %v274 = vld [vmem:[%s1 + $0x160] sm:$0xff]
        %v275 = vld [vmem:[%s1 + $0x168] sm:$0xff]
        %v276 = vld [vmem:[%s1 + $0x170] sm:$0xff]
        %v277 = vld [vmem:[%s1 + $0x178] sm:$0xff]
        %v278 = vld [vmem:[%s1 + $0x180] sm:$0xff]
        %v279 = vld [vmem:[%s1 + $0x188] sm:$0xff]
        %v280 = vld [vmem:[%s1 + $0x190] sm:$0xff]
        %v281 = vld [vmem:[%s1 + $0x198] sm:$0xff]
        %v282 = vld [vmem:[%s1 + $0x1a0] sm:$0xff]
        %v283 = vld [vmem:[%s1 + $0x1a8] sm:$0xff]
        %v284 = vld [vmem:[%s1 + $0x1b0] sm:$0xff]
        %v285 = vld [vmem:[%s1 + $0x1b8] sm:$0xff]
        %v286 = vld [vmem:[%s1 + $0x1c0] sm:$0xff]
        %v287 = vld [vmem:[%s1 + $0x1c8] sm:$0xff]
        %v288 = vld [vmem:[%s1 + $0x1d0] sm:$0xff]
        %v289 = vld [vmem:[%s1 + $0x1d8] sm:$0xff]
        %v290 = vld [vmem:[%s1 + $0x1e0] sm:$0xff]
        %v291 = vld [vmem:[%s1 + $0x1e8] sm:$0xff]
        %v292 = vld [vmem:[%s1 + $0x1f0] sm:$0xff]
        %v293 = vld [vmem:[%s1 + $0x1f8] sm:$0xff]
        %v294 = vld [vmem:[%s225] sm:$0xff]
        %v295 = vld [vmem:[%s225 + $0x8] sm:$0xff]
        %v296 = vld [vmem:[%s225 + $0x10] sm:$0xff]
        %v297 = vld [vmem:[%s225 + $0x18] sm:$0xff]
        %v298 = vld [vmem:[%s225 + $0x20] sm:$0xff]
        %v299 = vld [vmem:[%s225 + $0x28] sm:$0xff]
        %v300 = vld [vmem:[%s225 + $0x30] sm:$0xff]
        %v301 = vld [vmem:[%s225 + $0x38] sm:$0xff]
        %v304 = vunpack.c.l.b16 %v228
        %v305 = vunpack.c.h.b16 %v228
        %v306 = vunpack.c.l.b16 %v229
        %v307 = vunpack.c.h.b16 %v229
        %v308 = vpack.c.b16 %v306, %v304
        %v309 = vpack.c.b16 %v307, %v305
        %v376 = vunpack.c.l.b16 %v230
        %v377 = vunpack.c.h.b16 %v230
        %v378 = vunpack.c.l.b16 %v231
        %v379 = vunpack.c.h.b16 %v231
        %v380 = vunpack.c.l.b16 %v232
        %v381 = vunpack.c.h.b16 %v232
        %v382 = vunpack.c.l.b16 %v233
        %v383 = vunpack.c.h.b16 %v233
        %v384 = vunpack.c.l.b16 %v234
        %v385 = vunpack.c.h.b16 %v234
        %v386 = vunpack.c.l.b16 %v235
        %v387 = vunpack.c.h.b16 %v235
        %v388 = vunpack.c.l.b16 %v236
        %v389 = vunpack.c.h.b16 %v236
        %v390 = vunpack.c.l.b16 %v237
        %v391 = vunpack.c.h.b16 %v237
        %v392 = vunpack.c.l.b16 %v238
        %v393 = vunpack.c.h.b16 %v238
        %v394 = vunpack.c.l.b16 %v239
        %v395 = vunpack.c.h.b16 %v239
        %v396 = vunpack.c.l.b16 %v240
        %v397 = vunpack.c.h.b16 %v240
        %v398 = vunpack.c.l.b16 %v241
        %v399 = vunpack.c.h.b16 %v241
        %v400 = vunpack.c.l.b16 %v242
        %v401 = vunpack.c.h.b16 %v242
        %v402 = vunpack.c.l.b16 %v243
        %v403 = vunpack.c.h.b16 %v243
        %v404 = vunpack.c.l.b16 %v244
        %v405 = vunpack.c.h.b16 %v244
        %v406 = vunpack.c.l.b16 %v245
        %v407 = vunpack.c.h.b16 %v245
        %v408 = vunpack.c.l.b16 %v246
        %v409 = vunpack.c.h.b16 %v246
        %v410 = vunpack.c.l.b16 %v247
        %v411 = vunpack.c.h.b16 %v247
        %v412 = vunpack.c.l.b16 %v248
        %v413 = vunpack.c.h.b16 %v248
        %v414 = vunpack.c.l.b16 %v249
        %v415 = vunpack.c.h.b16 %v249
        %v416 = vunpack.c.l.b16 %v250
        %v417 = vunpack.c.h.b16 %v250
        %v418 = vunpack.c.l.b16 %v251
        %v419 = vunpack.c.h.b16 %v251
        %v420 = vunpack.c.l.b16 %v252
        %v421 = vunpack.c.h.b16 %v252
        %v422 = vunpack.c.l.b16 %v253
        %v423 = vunpack.c.h.b16 %v253
        %v424 = vunpack.c.l.b16 %v254
        %v425 = vunpack.c.h.b16 %v254
        %v426 = vunpack.c.l.b16 %v255
        %v427 = vunpack.c.h.b16 %v255
        %v428 = vunpack.c.l.b16 %v256
        %v429 = vunpack.c.h.b16 %v256
        %v430 = vunpack.c.l.b16 %v257
        %v431 = vunpack.c.h.b16 %v257
        %v432 = vunpack.c.l.b16 %v258
        %v433 = vunpack.c.h.b16 %v258
        %v434 = vunpack.c.l.b16 %v259
        %v435 = vunpack.c.h.b16 %v259
        %v436 = vunpack.c.l.b16 %v260
        %v437 = vunpack.c.h.b16 %v260
        %v438 = vunpack.c.l.b16 %v261
        %v439 = vunpack.c.h.b16 %v261
        %v440 = vunpack.c.l.b16 %v262
        %v441 = vunpack.c.h.b16 %v262
        %v442 = vunpack.c.l.b16 %v263
        %v443 = vunpack.c.h.b16 %v263
        %v444 = vunpack.c.l.b16 %v264
        %v445 = vunpack.c.h.b16 %v264
        %v446 = vunpack.c.l.b16 %v265
        %v447 = vunpack.c.h.b16 %v265
        %v448 = vunpack.c.l.b16 %v266
        %v449 = vunpack.c.h.b16 %v266
        %v450 = vunpack.c.l.b16 %v267
        %v451 = vunpack.c.h.b16 %v267
        %v452 = vunpack.c.l.b16 %v268
        %v453 = vunpack.c.h.b16 %v268
        %v454 = vunpack.c.l.b16 %v269
        %v455 = vunpack.c.h.b16 %v269
        %v456 = vunpack.c.l.b16 %v270
        %v457 = vunpack.c.h.b16 %v270
        %v458 = vunpack.c.l.b16 %v271
        %v459 = vunpack.c.h.b16 %v271
        %v460 = vunpack.c.l.b16 %v272
        %v461 = vunpack.c.h.b16 %v272
        %v462 = vunpack.c.l.b16 %v273
        %v463 = vunpack.c.h.b16 %v273
        %v464 = vunpack.c.l.b16 %v274
        %v465 = vunpack.c.h.b16 %v274
        %v466 = vunpack.c.l.b16 %v275
        %v467 = vunpack.c.h.b16 %v275
        %v468 = vunpack.c.l.b16 %v276
        %v469 = vunpack.c.h.b16 %v276
        %v470 = vunpack.c.l.b16 %v277
        %v471 = vunpack.c.h.b16 %v277
        %v472 = vunpack.c.l.b16 %v278
        %v473 = vunpack.c.h.b16 %v278
        %v474 = vunpack.c.l.b16 %v279
        %v475 = vunpack.c.h.b16 %v279
        %v476 = vunpack.c.l.b16 %v280
        %v477 = vunpack.c.h.b16 %v280
        %v478 = vunpack.c.l.b16 %v281
        %v479 = vunpack.c.h.b16 %v281
        %v480 = vunpack.c.l.b16 %v282
        %v481 = vunpack.c.h.b16 %v282
        %v482 = vunpack.c.l.b16 %v283
        %v483 = vunpack.c.h.b16 %v283
        %v484 = vunpack.c.l.b16 %v284
        %v485 = vunpack.c.h.b16 %v284
        %v486 = vunpack.c.l.b16 %v285
        %v487 = vunpack.c.h.b16 %v285
        %v488 = vunpack.c.l.b16 %v286
        %v489 = vunpack.c.h.b16 %v286
        %v490 = vunpack.c.l.b16 %v287
        %v491 = vunpack.c.h.b16 %v287
        %v492 = vunpack.c.l.b16 %v288
        %v493 = vunpack.c.h.b16 %v288
        %v494 = vunpack.c.l.b16 %v289
        %v495 = vunpack.c.h.b16 %v289
        %v496 = vunpack.c.l.b16 %v290
        %v497 = vunpack.c.h.b16 %v290
        %v498 = vunpack.c.l.b16 %v291
        %v499 = vunpack.c.h.b16 %v291
        %v500 = vunpack.c.l.b16 %v292
        %v501 = vunpack.c.h.b16 %v292
        %v502 = vunpack.c.l.b16 %v293
        %v503 = vunpack.c.h.b16 %v293
        %v504 = vpack.c.b16 %v380, %v376
        %v505 = vpack.c.b16 %v381, %v377
        %v506 = vpack.c.b16 %v382, %v378
        %v507 = vpack.c.b16 %v383, %v379
        %v508 = vpack.c.b16 %v388, %v384
        %v509 = vpack.c.b16 %v389, %v385
        %v510 = vpack.c.b16 %v390, %v386
        %v511 = vpack.c.b16 %v391, %v387
        %v512 = vpack.c.b16 %v396, %v392
        %v513 = vpack.c.b16 %v397, %v393
        %v514 = vpack.c.b16 %v398, %v394
        %v515 = vpack.c.b16 %v399, %v395
        %v516 = vpack.c.b16 %v404, %v400
        %v517 = vpack.c.b16 %v405, %v401
        %v518 = vpack.c.b16 %v406, %v402
        %v519 = vpack.c.b16 %v407, %v403
        %v520 = vpack.c.b16 %v412, %v408
        %v521 = vpack.c.b16 %v413, %v409
        %v522 = vpack.c.b16 %v414, %v410
        %v523 = vpack.c.b16 %v415, %v411
        %v524 = vpack.c.b16 %v420, %v416
        %v525 = vpack.c.b16 %v421, %v417
        %v526 = vpack.c.b16 %v422, %v418
        %v527 = vpack.c.b16 %v423, %v419
        %v528 = vpack.c.b16 %v428, %v424
        %v529 = vpack.c.b16 %v429, %v425
        %v530 = vpack.c.b16 %v430, %v426
        %v531 = vpack.c.b16 %v431, %v427
        %v532 = vpack.c.b16 %v436, %v432
        %v533 = vpack.c.b16 %v437, %v433
        %v534 = vpack.c.b16 %v438, %v434
        %v535 = vpack.c.b16 %v439, %v435
        %v536 = vpack.c.b16 %v444, %v440
        %v537 = vpack.c.b16 %v445, %v441
        %v538 = vpack.c.b16 %v446, %v442
        %v539 = vpack.c.b16 %v447, %v443
        %v540 = vpack.c.b16 %v452, %v448
        %v541 = vpack.c.b16 %v453, %v449
        %v542 = vpack.c.b16 %v454, %v450
        %v543 = vpack.c.b16 %v455, %v451
        %v544 = vpack.c.b16 %v460, %v456
        %v545 = vpack.c.b16 %v461, %v457
        %v546 = vpack.c.b16 %v462, %v458
        %v547 = vpack.c.b16 %v463, %v459
        %v548 = vpack.c.b16 %v468, %v464
        %v549 = vpack.c.b16 %v469, %v465
        %v550 = vpack.c.b16 %v470, %v466
        %v551 = vpack.c.b16 %v471, %v467
        %v552 = vpack.c.b16 %v476, %v472
        %v553 = vpack.c.b16 %v477, %v473
        %v554 = vpack.c.b16 %v478, %v474
        %v555 = vpack.c.b16 %v479, %v475
        %v556 = vpack.c.b16 %v484, %v480
        %v557 = vpack.c.b16 %v485, %v481
        %v558 = vpack.c.b16 %v486, %v482
        %v559 = vpack.c.b16 %v487, %v483
        %v560 = vpack.c.b16 %v492, %v488
        %v561 = vpack.c.b16 %v493, %v489
        %v562 = vpack.c.b16 %v494, %v490
        %v563 = vpack.c.b16 %v495, %v491
        %v564 = vpack.c.b16 %v500, %v496
        %v565 = vpack.c.b16 %v501, %v497
        %v566 = vpack.c.b16 %v502, %v498
        %v567 = vpack.c.b16 %v503, %v499
        %632 = vmatprep.subr.bf16.mxu0 %v505
        %633 = vmatpush1.bf16.msra.mxu0 %v504
        %634 = vmatprep.subr.bf16.mxu0 %v509
        %635 = vmatpush1.bf16.msra.mxu0 %v508
        %636 = vmatprep.subr.bf16.mxu0 %v513
        %637 = vmatpush1.bf16.msra.mxu0 %v512
        %638 = vmatprep.subr.bf16.mxu0 %v517
        %639 = vmatpush1.bf16.msra.mxu0 %v516
        %640 = vmatprep.subr.bf16.mxu0 %v521
        %641 = vmatpush1.bf16.msra.mxu0 %v520
        %642 = vmatprep.subr.bf16.mxu0 %v525
        %643 = vmatpush1.bf16.msra.mxu0 %v524
        %644 = vmatprep.subr.bf16.mxu0 %v529
        %645 = vmatpush1.bf16.msra.mxu0 %v528
        %646 = vmatprep.subr.bf16.mxu0 %v533
        %647 = vmatpush1.bf16.msra.mxu0 %v532
        %648 = vmatprep.subr.bf16.mxu0 %v537
        %649 = vmatpush1.bf16.msra.mxu0 %v536
        %650 = vmatprep.subr.bf16.mxu0 %v541
        %651 = vmatpush1.bf16.msra.mxu0 %v540
        %652 = vmatprep.subr.bf16.mxu0 %v545
        %653 = vmatpush1.bf16.msra.mxu0 %v544
        %654 = vmatprep.subr.bf16.mxu0 %v549
        %655 = vmatpush1.bf16.msra.mxu0 %v548
        %656 = vmatprep.subr.bf16.mxu0 %v553
        %657 = vmatpush1.bf16.msra.mxu0 %v552
        %658 = vmatprep.subr.bf16.mxu0 %v557
        %659 = vmatpush1.bf16.msra.mxu0 %v556
        %660 = vmatprep.subr.bf16.mxu0 %v561
        %661 = vmatpush1.bf16.msra.mxu0 %v560
        %662 = vmatprep.subr.bf16.mxu0 %v565
        %663 = vmatpush1.bf16.msra.mxu0 %v564
        %664 = vmatprep.mubr.bf16.mxu0 %v309
        %665 = vmatmul.mubr.bf16.gmra.mrb[0].mxu0 %v308
        %v666 = vpop.f32.mrb[0].mxu0
        %v667 = vadd.f32 %v294, %v666
        %v668 = vpop.f32.mrb[0].mxu0
        %v669 = vadd.f32 %v295, %v668
        %v670 = vpop.f32.mrb[0].mxu0
        %v671 = vadd.f32 %v298, %v670
        %v672 = vpop.f32.mrb[0].mxu0
        %v673 = vadd.f32 %v299, %v672
        %674 = vdwg.mxu0
        %675 = vmatprep.subr.bf16.mxu0 %v507
        %676 = vmatpush1.bf16.msra.mxu0 %v506
        %677 = vmatprep.subr.bf16.mxu0 %v511
        %678 = vmatpush1.bf16.msra.mxu0 %v510
        %679 = vmatprep.subr.bf16.mxu0 %v515
        %680 = vmatpush1.bf16.msra.mxu0 %v514
        %681 = vmatprep.subr.bf16.mxu0 %v519
        %682 = vmatpush1.bf16.msra.mxu0 %v518
        %683 = vmatprep.subr.bf16.mxu0 %v523
        %684 = vmatpush1.bf16.msra.mxu0 %v522
        %685 = vmatprep.subr.bf16.mxu0 %v527
        %686 = vmatpush1.bf16.msra.mxu0 %v526
        %687 = vmatprep.subr.bf16.mxu0 %v531
        %688 = vmatpush1.bf16.msra.mxu0 %v530
        %689 = vmatprep.subr.bf16.mxu0 %v535
        %690 = vmatpush1.bf16.msra.mxu0 %v534
        %691 = vmatprep.subr.bf16.mxu0 %v539
        %692 = vmatpush1.bf16.msra.mxu0 %v538
        %693 = vmatprep.subr.bf16.mxu0 %v543
        %694 = vmatpush1.bf16.msra.mxu0 %v542
        %695 = vmatprep.subr.bf16.mxu0 %v547
        %696 = vmatpush1.bf16.msra.mxu0 %v546
        %697 = vmatprep.subr.bf16.mxu0 %v551
        %698 = vmatpush1.bf16.msra.mxu0 %v550
        %699 = vmatprep.subr.bf16.mxu0 %v555
        %700 = vmatpush1.bf16.msra.mxu0 %v554
        %701 = vmatprep.subr.bf16.mxu0 %v559
        %702 = vmatpush1.bf16.msra.mxu0 %v558
        %703 = vmatprep.subr.bf16.mxu0 %v563
        %704 = vmatpush1.bf16.msra.mxu0 %v562
        %705 = vmatprep.subr.bf16.mxu0 %v567
        %706 = vmatpush1.bf16.msra.mxu0 %v566
        %707 = vmatprep.mubr.bf16.mxu0 %v309
        %708 = vmatmul.mubr.bf16.gmra.mrb[0].mxu0 %v308
        %v709 = vpop.f32.mrb[0].mxu0
        %v710 = vadd.f32 %v296, %v709
        %v711 = vpop.f32.mrb[0].mxu0
        %v712 = vadd.f32 %v297, %v711
        %v713 = vpop.f32.mrb[0].mxu0
        %v714 = vadd.f32 %v300, %v713
        %v715 = vpop.f32.mrb[0].mxu0
        %v716 = vadd.f32 %v301, %v715
        %717 = vdwg.mxu0
        %718 = vst [vmem:[%s208] sm:$0xff] %v667
        %719 = vst [vmem:[%s208 + $0x8] sm:$0xff] %v669
        %720 = vst [vmem:[%s208 + $0x10] sm:$0xff] %v710
        %721 = vst [vmem:[%s208 + $0x18] sm:$0xff] %v712
        %722 = vst [vmem:[%s208 + $0x20] sm:$0xff] %v671
        %723 = vst [vmem:[%s208 + $0x28] sm:$0xff] %v673
        %724 = vst [vmem:[%s208 + $0x30] sm:$0xff] %v714
        %725 = vst [vmem:[%s208 + $0x38] sm:$0xff] %v716
        %s726 = sand.u32 %s114, 1
        %s727 = scalar_lea.sflag [#allocation3], %s726
        %s728 = sand.u32 %s114, 1
        %s729 = smul.addr %s728, 64
        %s730 = scalar_lea.vmem [#allocation2], %s729
        // Predicated region
        $region33: #{csi_tokenizer_forward.1} parent=31 // pred_check
          %p731 = pneg %p124
        $region34: #{csi_tokenizer_forward.1} parent=31 // pred_check_branch
          %733 = sbr.rel (%p731) target = $region36
        $region35: #{csi_tokenizer_forward.1} parent=31 // pred_region
          %s734 = smul.u32 2, %s22
          %s736 = ssub.s32 1024, 1024
          %737 = vsyncadd %s727, %s736
          %s738 = smul.addr %s734, 4
          %s739 = smul.addr %s21, 8
          %s740 = sadd.s32 %s738, %s739
          %s741 = smul.addr %s740, 128
          %s742 = scalar_lea.hbm %s3, %s741
          %s743 = sshll.u32 %s730, 4
          %s744 = int_to_ptr.vmem [resolvable:$true] %s743
          %749 = dma.vmem_to_hbm [thread:$0]  %s744, 1024, %s742, %s727, 512, 512, 32
        $region36: #{csi_tokenizer_forward.1} parent=31 // pred_fallthru
          _
      $region32: #{csi_tokenizer_forward.1} parent=5 // pred_fallthru
        _
      %p750 = scmp.le.s32.totalorder 2, %s12
      // Predicated region
      $region37: #{csi_tokenizer_forward.1} parent=5 // pred_check
        %p751 = pneg %p750
      $region38: #{csi_tokenizer_forward.1} parent=5 // pred_check_branch
        %753 = sbr.rel (%p751) target = $region40
      $region39: #{csi_tokenizer_forward.1} parent=5 // pred_region
        %s754 = ssub.s32 %s12, 2
        // Predicated region
        $region41: #{csi_tokenizer_forward.1} parent=39 // pred_check
          %p755 = pneg %p130
        $region42: #{csi_tokenizer_forward.1} parent=39 // pred_check_branch
          %757 = sbr.rel (%p755) target = $region44
        $region43: #{csi_tokenizer_forward.1} parent=39 // pred_region
          %s758 = sand.u32 %s115, 1
          %s759 = scalar_lea.sflag [#allocation3], %s758
          %s760 = sand.u32 %s115, 1
          %s761 = smul.addr %s760, 64
          %s762 = scalar_lea.vmem [#allocation2], %s761
          %763 = dma.done %s759, 1024
        $region44: #{csi_tokenizer_forward.1} parent=39 // pred_fallthru
          _
      $region40: #{csi_tokenizer_forward.1} parent=5 // pred_fallthru
        _
    $region6: #{csi_tokenizer_forward.1} parent=1 // loop_footer
      %s16 = sadd.s32 1, %s12
    $region7: #{csi_tokenizer_forward.1} parent=1 // loop_footer_branch
      %11 = sbr.rel target = $region3
    $region8: #{csi_tokenizer_forward.1} parent=1 // loop_exit
      _
    %764 = vsyncpa [#allocation3], 1
    %s765 = scalar_lea.sflag [#allocation3], 1
    %766 = vsyncpa %s765, 1

</llo_original>
